<compile_context>
chip_gen: v7x
topology: tpu7x:2x2x1
jax: 0.10.0
libtpu: 0.0.40
codegen_flags: <defaults>
</compile_context>

<pallas_src>
import functools

import jax
import jax.numpy as jnp
from jax import lax
from jax.experimental import pallas as pl
from jax.experimental.pallas import tpu as pltpu


def _perplexity_kernel(x_ref, o_ref, m_sc, s_sc, sum_sc, *, num_classes, tc, need_mask):
    """Online logsumexp + running row-sum over a streamed class axis.

    grid = (row_tiles, class_tiles); the class axis is last / "arbitrary".
    x_ref: (tm, tc) logits tile, o_ref: (tm, 1) per-row perplexity (f32),
    scratch: running max / rescaled exp-sum / raw row-sum, each (tm, 1) f32.
    """
    j = pl.program_id(1)

    @pl.when(j == 0)
    def _():
        m_sc[...] = jnp.full_like(m_sc, -jnp.inf)
        s_sc[...] = jnp.zeros_like(s_sc)
        sum_sc[...] = jnp.zeros_like(sum_sc)

    # Upcast per tile; HBM reads stay in the input dtype (halves bytes for bf16).
    x = x_ref[...].astype(jnp.float32)
    if need_mask:
        col = j * tc + lax.broadcasted_iota(jnp.int32, x.shape, 1)
        valid = col < num_classes
        x_lse = jnp.where(valid, x, -jnp.inf)   # padded cols contribute exp() = 0
        x_sum = jnp.where(valid, x, 0.0)        # padded cols contribute 0 to the sum
    else:
        x_lse = x
        x_sum = x

    m_old = m_sc[...]
    m_new = jnp.maximum(m_old, jnp.max(x_lse, axis=-1, keepdims=True))
    s_sc[...] = s_sc[...] * jnp.exp(m_old - m_new) + jnp.sum(
        jnp.exp(x_lse - m_new), axis=-1, keepdims=True)
    m_sc[...] = m_new
    sum_sc[...] = sum_sc[...] + jnp.sum(x_sum, axis=-1, keepdims=True)

    @pl.when(j == pl.num_programs(1) - 1)
    def _():
        lse = m_sc[...] + jnp.log(s_sc[...])
        mean_x = sum_sc[...] * (1.0 / num_classes)
        # exp(-mean(log_softmax)) == exp(logsumexp(x) - mean(x)); keep f32 output.
        o_ref[...] = jnp.exp(lse - mean_x)


def _round_up(x, m):
    return ((x + m - 1) // m) * m


def _choose_tiles(B, C, itemsize):
    # Stream the class axis only when it is too wide for a single comfortable tile.
    tc = C if C <= 8192 else 2048  # 2048 is a multiple of 128
    # VMEM per row: double-buffered input tile + f32 working temps inside the kernel.
    per_row_bytes = 2 * tc * itemsize + 3 * tc * 4
    budget = 40 * 1024 * 1024  # fits v7x's 64 MiB physical VMEM with headroom
    tm = max(8, min(1024, (budget // per_row_bytes) // 8 * 8))
    if B > 8:
        # Keep >= 2 row tiles so both v7x TensorCores get work.
        tm = min(tm, max(8, _round_up((B + 1) // 2, 8)))
    tm = min(tm, _round_up(B, 8))
    return tm, tc


def perplexity_criterion(logits: jax.Array, *, tm: int | None = None,
                         tc: int | None = None) -> jax.Array:
    """Pallas equivalent of PerplexityCriterion.forward for 2-D logits [B, C]."""
    assert logits.ndim == 2, "logits must be 2-D [batch, classes]"
    B, C = logits.shape
    itemsize = jnp.dtype(logits.dtype).itemsize

    auto_tm, auto_tc = _choose_tiles(B, C, itemsize)
    tm = auto_tm if tm is None else tm
    tc = auto_tc if tc is None else tc

    # Pad rows (garbage rows sliced off afterwards) and classes (masked in-kernel).
    Bp = _round_up(B, tm)
    Cp = C if tc == C else _round_up(C, tc)
    x = logits
    if Bp != B or Cp != C:
        x = jnp.pad(x, ((0, Bp - B), (0, Cp - C)))
    need_mask = Cp != C

    grid = (Bp // tm, Cp // tc)

    # Explicit scoped-VMEM limit sized to the tile (double-buffered input dtype
    # copy + f32 working set), clamped below v7x's 64 MiB physical VMEM.
    vmem_est = 2 * tm * tc * itemsize + 4 * tm * tc * 4 + 2 * 1024 * 1024
    vmem_limit = int(min(48 * 1024 * 1024, max(16 * 1024 * 1024, vmem_est)))

    kernel = functools.partial(
        _perplexity_kernel, num_classes=C, tc=tc, need_mask=need_mask)

    out2d = pl.pallas_call(
        kernel,
        out_shape=jax.ShapeDtypeStruct((Bp, 1), jnp.float32),
        grid_spec=pltpu.PrefetchScalarGridSpec(
            num_scalar_prefetch=0,
            grid=grid,
            in_specs=[pl.BlockSpec((tm, tc), lambda i, j: (i, j))],
            out_specs=pl.BlockSpec((tm, 1), lambda i, j: (i, 0)),
            scratch_shapes=[pltpu.VMEM((tm, 1), jnp.float32)] * 3,
        ),
        compiler_params=pltpu.CompilerParams(
            dimension_semantics=("parallel", "arbitrary"),
            vmem_limit_bytes=vmem_limit,
        ),
    )(x)
    return out2d[:B, 0]  # -> [B], matching torch's mean(dim=-1) result shape


if __name__ == "__main__":
    # Module has no parameters; just build deterministic example logits.
    def ref(l):
        lf = l.astype(jnp.float32)
        return jnp.exp(-jnp.mean(jax.nn.log_softmax(lf, axis=-1), axis=-1))

    # 1) basic case: single class tile, two row tiles (auto tiling).
    B, C = 16, 512
    logits = jax.random.normal(jax.random.PRNGKey(0), (B, C), dtype=jnp.float32)
    out = perplexity_criterion(logits)
    jax.block_until_ready(out)
    assert out.shape == (B,)
    assert jnp.allclose(out, ref(logits), rtol=1e-5, atol=1e-5)

    # 2) streamed class axis with uneven B and C -> row padding + in-kernel masking.
    B2, C2 = 13, 300
    logits2 = jax.random.normal(jax.random.PRNGKey(0), (B2, C2), dtype=jnp.float32)
    out2 = perplexity_criterion(logits2, tm=8, tc=128)
    jax.block_until_ready(out2)
    assert out2.shape == (B2,)
    assert jnp.allclose(out2, ref(logits2), rtol=1e-5, atol=1e-5)

    print("KERNEL_OK")
</pallas_src>

<mosaic_0001>
module attributes {stable_mosaic.version = 11 : i64} {
  func.func @_perplexity_kernel(%arg0: i32, %arg1: i32, %arg2: memref<8x512xf32, #tpu.memory_space<vmem>>, %arg3: memref<8x1xf32, #tpu.memory_space<vmem>>, %arg4: memref<8x1xf32, #tpu.memory_space<vmem>>, %arg5: memref<8x1xf32, #tpu.memory_space<vmem>>, %arg6: memref<8x1xf32, #tpu.memory_space<vmem>>) attributes {dimension_semantics = [#tpu.dimension_semantics<parallel>, #tpu.dimension_semantics<arbitrary>], iteration_bounds = array<i64: 2, 1>, scalar_prefetch = 0 : i64, scratch_operands = 3 : i64, tpu.core_type = #tpu.core_type<tc>, window_params = [{transform_indices = @transform_0, window_bounds = array<i64: 8, 512>}, {transform_indices = @transform_1, window_bounds = array<i64: 8, 1>}]} {
    %c0_i32 = arith.constant 0 : i32
    %0 = arith.cmpi eq, %arg1, %c0_i32 : i32
    %1 = arith.extui %0 : i1 to i32
    %c0_i32_0 = arith.constant 0 : i32
    %2 = arith.cmpi ne, %1, %c0_i32_0 : i32
    scf.if %2 {
      %cst_18 = arith.constant 0xFF800000 : f32
      %28 = vector.broadcast %cst_18 : f32 to vector<8x1xf32>
      %c0_19 = arith.constant 0 : index
      %c0_20 = arith.constant 0 : index
      %29 = vector.load %arg4[%c0_19, %c0_20] : memref<8x1xf32, #tpu.memory_space<vmem>>, vector<8x1xf32>
      tpu.vector_store %arg4[%c0_19, %c0_20], %28 {strides = array<i32>} : memref<8x1xf32, #tpu.memory_space<vmem>>, vector<8x1xf32>,
      %cst_21 = arith.constant 0.000000e+00 : f32
      %30 = vector.broadcast %cst_21 : f32 to vector<8x1xf32>
      %c0_22 = arith.constant 0 : index
      %c0_23 = arith.constant 0 : index
      %31 = vector.load %arg5[%c0_22, %c0_23] : memref<8x1xf32, #tpu.memory_space<vmem>>, vector<8x1xf32>
      tpu.vector_store %arg5[%c0_22, %c0_23], %30 {strides = array<i32>} : memref<8x1xf32, #tpu.memory_space<vmem>>, vector<8x1xf32>,
      %cst_24 = arith.constant 0.000000e+00 : f32
      %32 = vector.broadcast %cst_24 : f32 to vector<8x1xf32>
      %c0_25 = arith.constant 0 : index
      %c0_26 = arith.constant 0 : index
      %33 = vector.load %arg6[%c0_25, %c0_26] : memref<8x1xf32, #tpu.memory_space<vmem>>, vector<8x1xf32>
      tpu.vector_store %arg6[%c0_25, %c0_26], %32 {strides = array<i32>} : memref<8x1xf32, #tpu.memory_space<vmem>>, vector<8x1xf32>,
    } else {
    }
    %c0 = arith.constant 0 : index
    %c0_1 = arith.constant 0 : index
    %3 = vector.load %arg2[%c0, %c0_1] : memref<8x512xf32, #tpu.memory_space<vmem>>, vector<8x512xf32>
    %c0_2 = arith.constant 0 : index
    %c0_3 = arith.constant 0 : index
    %4 = vector.load %arg4[%c0_2, %c0_3] : memref<8x1xf32, #tpu.memory_space<vmem>>, vector<8x1xf32>
    %cst = arith.constant dense<0xFF800000> : vector<8xf32>
    %5 = vector.multi_reduction <maximumf>, %3, %cst [1] : vector<8x512xf32> to vector<8xf32>
    %6 = vector.shape_cast %5 : vector<8xf32> to vector<8x1xf32>
    %7 = arith.maximumf %4, %6 : vector<8x1xf32>
    %c0_4 = arith.constant 0 : index
    %c0_5 = arith.constant 0 : index
    %8 = vector.load %arg5[%c0_4, %c0_5] : memref<8x1xf32, #tpu.memory_space<vmem>>, vector<8x1xf32>
    %9 = arith.subf %4, %7 : vector<8x1xf32>
    %10 = math.exp %9 : vector<8x1xf32>
    %11 = arith.mulf %8, %10 : vector<8x1xf32>
    %12 = vector.broadcast %7 : vector<8x1xf32> to vector<8x512xf32>
    %13 = arith.subf %3, %12 : vector<8x512xf32>
    %14 = math.exp %13 : vector<8x512xf32>
    %cst_6 = arith.constant dense<0.000000e+00> : vector<8xf32>
    %15 = vector.multi_reduction <add>, %14, %cst_6 [1] : vector<8x512xf32> to vector<8xf32>
    %16 = vector.shape_cast %15 : vector<8xf32> to vector<8x1xf32>
    %17 = arith.addf %11, %16 : vector<8x1xf32>
    %c0_7 = arith.constant 0 : index
    %c0_8 = arith.constant 0 : index
    %18 = vector.load %arg5[%c0_7, %c0_8] : memref<8x1xf32, #tpu.memory_space<vmem>>, vector<8x1xf32>
    tpu.vector_store %arg5[%c0_7, %c0_8], %17 {strides = array<i32>} : memref<8x1xf32, #tpu.memory_space<vmem>>, vector<8x1xf32>,
    %c0_9 = arith.constant 0 : index
    %c0_10 = arith.constant 0 : index
    %19 = vector.load %arg4[%c0_9, %c0_10] : memref<8x1xf32, #tpu.memory_space<vmem>>, vector<8x1xf32>
    tpu.vector_store %arg4[%c0_9, %c0_10], %7 {strides = array<i32>} : memref<8x1xf32, #tpu.memory_space<vmem>>, vector<8x1xf32>,
    %c0_11 = arith.constant 0 : index
    %c0_12 = arith.constant 0 : index
    %20 = vector.load %arg6[%c0_11, %c0_12] : memref<8x1xf32, #tpu.memory_space<vmem>>, vector<8x1xf32>
    %cst_13 = arith.constant dense<0.000000e+00> : vector<8xf32>
    %21 = vector.multi_reduction <add>, %3, %cst_13 [1] : vector<8x512xf32> to vector<8xf32>
    %22 = vector.shape_cast %21 : vector<8xf32> to vector<8x1xf32>
    %23 = arith.addf %20, %22 : vector<8x1xf32>
    %c0_14 = arith.constant 0 : index
    %c0_15 = arith.constant 0 : index
    %24 = vector.load %arg6[%c0_14, %c0_15] : memref<8x1xf32, #tpu.memory_space<vmem>>, vector<8x1xf32>
    tpu.vector_store %arg6[%c0_14, %c0_15], %23 {strides = array<i32>} : memref<8x1xf32, #tpu.memory_space<vmem>>, vector<8x1xf32>,
    %c0_i32_16 = arith.constant 0 : i32
    %25 = arith.cmpi eq, %arg1, %c0_i32_16 : i32
    %26 = arith.extui %25 : i1 to i32
    %c0_i32_17 = arith.constant 0 : i32
    %27 = arith.cmpi ne, %26, %c0_i32_17 : i32
    scf.if %27 {
      %c0_18 = arith.constant 0 : index
      %c0_19 = arith.constant 0 : index
      %28 = vector.load %arg4[%c0_18, %c0_19] : memref<8x1xf32, #tpu.memory_space<vmem>>, vector<8x1xf32>
      %c0_20 = arith.constant 0 : index
      %c0_21 = arith.constant 0 : index
      %29 = vector.load %arg5[%c0_20, %c0_21] : memref<8x1xf32, #tpu.memory_space<vmem>>, vector<8x1xf32>
      %30 = math.log %29 : vector<8x1xf32>
      %31 = arith.addf %28, %30 : vector<8x1xf32>
      %c0_22 = arith.constant 0 : index
      %c0_23 = arith.constant 0 : index
      %32 = vector.load %arg6[%c0_22, %c0_23] : memref<8x1xf32, #tpu.memory_space<vmem>>, vector<8x1xf32>
      %cst_24 = arith.constant 0.001953125 : f32
      %33 = vector.broadcast %cst_24 : f32 to vector<8x1xf32>
      %34 = arith.mulf %32, %33 : vector<8x1xf32>
      %35 = arith.subf %31, %34 : vector<8x1xf32>
      %36 = math.exp %35 : vector<8x1xf32>
      %c0_25 = arith.constant 0 : index
      %c0_26 = arith.constant 0 : index
      %37 = vector.load %arg3[%c0_25, %c0_26] : memref<8x1xf32, #tpu.memory_space<vmem>>, vector<8x1xf32>
      tpu.vector_store %arg3[%c0_25, %c0_26], %36 {strides = array<i32>} : memref<8x1xf32, #tpu.memory_space<vmem>>, vector<8x1xf32>,
    } else {
    }
    return
  }
  func.func @transform_0(%arg0: i32, %arg1: i32) -> (i32, i32) {
    %c0_i32 = arith.constant 0 : i32
    return %arg0, %arg1 : i32, i32
  }
  func.func @transform_1(%arg0: i32, %arg1: i32) -> (i32, i32) {
    %c0_i32 = arith.constant 0 : i32
    %c0_i32_0 = arith.constant 0 : i32
    return %arg0, %c0_i32 : i32, i32
  }
}

</mosaic_0001>

<llo_original>
// kernel: tpu_custom_call.1
$region0: #{tpu_custom_call.1}
  #allocation0 [shape = 'u32[]', space=smem, size = 0x4, offset = 0x4, fixed_abs, tag = 'smem constant byte address 0x4 - core index']
  #allocation1 [shape = 'u32[144,128]{1,0:T(1,128)}', space=vmem, size = 0x12000, scoped, tag = 'internal scratch']
  #allocation2 [shape = 'f32[8,1]{1,0:T(8,128)}', space=vmem, size = 0x1000, scoped, tag = 'scratch operand']
  #allocation3 [shape = 'f32[8,1]{1,0:T(8,128)}', space=vmem, size = 0x1000, scoped, tag = 'scratch operand']
  #allocation4 [shape = 'f32[8,1]{1,0:T(8,128)}', space=vmem, size = 0x1000, scoped, tag = 'scratch operand']
  %s0 = inlined_call_operand.hbm [shape: f32[16,512], index: 0, kind: input, shape index: {}]
  %s1 = inlined_call_operand.vmem [shape: f32[16,1], index: 1, kind: output, shape index: {}]
  %s2 = sld [smem:[#allocation0]]
  $region49: #{tpu_custom_call.1} parent=0
    _
  %s4 = ssub.s32 1, %s2
  %s5 = scalar_select 0, %s4, %s2
  $region1: #{tpu_custom_call.1} parent=0
    #allocation5 [shape = 'u8[32768]{0}', space=vmem, size = 0x8000, scoped, tag = 'input window, operand 0']
    #allocation6 [shape = 's32[2]{0}', space=sflag, size = 0x8, scoped, tag = 'scoped memory for tpu_custom_call.1']
    %6 = vsyncpa [#allocation6], 0
    %s7 = scalar_lea.sflag [#allocation6], 1
    %8 = vsyncpa %s7, 0
    loop: start=0, step=1, limit=4
    $region2: #{tpu_custom_call.1} parent=1 // loop_pre_header
      _
    $region3: #{tpu_custom_call.1} parent=1 // loop_header
      %s10 = sphi 0, %s14
      %p11 = scmp.ge.s32.totalorder %s10, 4
      %s17 = sphi 0, %s29
      %s18 = sphi 0, %s25
      %s19 = sphi 0, %s17
      %s20 = sphi 0, %s18
      %s21 = sphi 0, %s19
      %s22 = sphi 0, %s20
      %s34 = sphi 0, %s36
      %s37 = sphi 0, %s34
      %s38 = sphi 0, %s37
      %s54 = sphi 0, %s38
      %s60 = sphi 0, %s62
      %s63 = sphi 0, %s60
      %s64 = sphi 0, %s63
      %s80 = sphi 0, %s64
    $region4: #{tpu_custom_call.1} parent=1 // loop_header_branch
      %13 = sbr.rel (%p11) target = $region8
    $region5: #{tpu_custom_call.1} parent=1 // loop_body
      %s15 = ssub.s32 %s10, 1
      %s16 = ssub.s32 %s10, 2
      %s23 = sadd.s32 1, %s18
      %p24 = scmp.ge.s32.totalorder %s23, 1
      %s25 = scalar_select %p24, 0, %s23
      %s26 = sadd.s32 1, %s17
      %s27 = scalar_select %p24, %s26, %s17
      %p28 = scmp.ge.s32.totalorder %s27, 2
      %s29 = scalar_select %p28, 0, %s27
      %s30 = ssub.s32 %s17, %s29
      %s31 = ssub.s32 %s18, %s25
      %s32 = sor.u32 %s30, %s31
      %p33 = scmp.eq.s32.totalorder %s32, 0
      %s35 = sadd.s32 %s34, 1
      %s36 = scalar_select %p33, %s34, %s35
      %p39 = pneg %p33
      %p40 = scmp.eq.s32.totalorder %s10, 1
      %p41 = por %p39, %p40
      %p42 = scmp.ne.s32.totalorder %s34, %s37
      %p43 = scmp.eq.s32.totalorder %s10, 0
      %p44 = por %p42, %p43
      %p45 = scmp.ne.s32.totalorder %s34, %s37
      %p46 = scmp.eq.s32.totalorder %s15, 1
      %p47 = por %p45, %p46
      %p48 = scmp.ne.s32.totalorder %s37, %s38
      %p49 = scmp.eq.s32.totalorder %s15, 0
      %p50 = por %p48, %p49
      %p51 = scmp.ne.s32.totalorder %s37, %s38
      %p52 = scmp.eq.s32.totalorder %s16, 1
      %p53 = por %p51, %p52
      %p55 = scmp.ne.s32.totalorder %s38, %s54
      %p56 = scmp.eq.s32.totalorder %s16, 0
      %p57 = por %p55, %p56
      %s58 = ssub.s32 %s17, %s29
      %p59 = scmp.eq.s32.totalorder %s58, 0
      %s61 = sadd.s32 %s60, 1
      %s62 = scalar_select %p59, %s60, %s61
      %p65 = pneg %p59
      %p66 = scmp.eq.s32.totalorder %s10, 1
      %p67 = por %p65, %p66
      %p68 = scmp.ne.s32.totalorder %s60, %s63
      %p69 = scmp.eq.s32.totalorder %s10, 0
      %p70 = por %p68, %p69
      %p71 = scmp.ne.s32.totalorder %s60, %s63
      %p72 = scmp.eq.s32.totalorder %s15, 1
      %p73 = por %p71, %p72
      %p74 = scmp.ne.s32.totalorder %s63, %s64
      %p75 = scmp.eq.s32.totalorder %s15, 0
      %p76 = por %p74, %p75
      %p77 = scmp.ne.s32.totalorder %s63, %s64
      %p78 = scmp.eq.s32.totalorder %s16, 1
      %p79 = por %p77, %p78
      %p81 = scmp.ne.s32.totalorder %s64, %s80
      %p82 = scmp.eq.s32.totalorder %s16, 0
      %p83 = por %p81, %p82
      %p84 = scmp.le.s32.totalorder 1, %s10
      %p85 = scmp.lt.s32.totalorder %s10, 3
      %p86 = pnand %p84, %p85
      %p87 = pneg %p86
      // Predicated region
      $region9: #{tpu_custom_call.1} parent=5 // pred_check
        _
      $region10: #{tpu_custom_call.1} parent=5 // pred_check_branch
        %89 = sbr.rel (%p86) target = $region12
      $region11: #{tpu_custom_call.1} parent=5 // pred_region
        %s90 = ssub.s32 %s10, 1
      $region12: #{tpu_custom_call.1} parent=5 // pred_fallthru
        _
      %p91 = scmp.lt.s32.totalorder %s10, 2
      // Predicated region
      $region13: #{tpu_custom_call.1} parent=5 // pred_check
        %p92 = pneg %p91
      $region14: #{tpu_custom_call.1} parent=5 // pred_check_branch
        %94 = sbr.rel (%p92) target = $region16
      $region15: #{tpu_custom_call.1} parent=5 // pred_region
        // Predicated region
        $region17: #{tpu_custom_call.1} parent=15 // pred_check
          %p95 = pneg %p44
        $region18: #{tpu_custom_call.1} parent=15 // pred_check_branch
          %97 = sbr.rel (%p95) target = $region20
        $region19: #{tpu_custom_call.1} parent=15 // pred_region
          %s98 = sand.u32 %s34, 1
          %s99 = scalar_lea.sflag [#allocation6], %s98
          %s100 = sand.u32 %s34, 1
          %s101 = smul.addr %s100, 32
          %s102 = scalar_lea.vmem [#allocation5], %s101
          %s103 = smul.u32 4, %s18
          %s105 = ssub.s32 512, 512
          %106 = vsyncadd %s99, %s105
          %s107 = smul.addr %s17, 4
          %s108 = sadd.s32 %s103, %s107
          %s109 = smul.addr %s108, 128
          %s110 = scalar_lea.hbm %s0, %s109
          %s112 = sshll.u32 %s102, 4
          %s113 = int_to_ptr.vmem [resolvable:$true] %s112
          %115 = dma.hbm_to_vmem [thread:$0]  %s110, 512, %s113, %s99
        $region20: #{tpu_custom_call.1} parent=15 // pred_fallthru
          _
      $region16: #{tpu_custom_call.1} parent=5 // pred_fallthru
        _
      %p116 = scmp.le.s32.totalorder 1, %s10
      %p117 = scmp.lt.s32.totalorder %s10, 3
      %p118 = pnand %p116, %p117
      %p119 = pneg %p118
      // Predicated region
      $region21: #{tpu_custom_call.1} parent=5 // pred_check
        _
      $region22: #{tpu_custom_call.1} parent=5 // pred_check_branch
        %121 = sbr.rel (%p118) target = $region24
      $region23: #{tpu_custom_call.1} parent=5 // pred_region
        %s122 = ssub.s32 %s10, 1
        %s123 = sand.u32 %s37, 1
        %s124 = scalar_lea.sflag [#allocation6], %s123
        %s125 = sand.u32 %s37, 1
        %s126 = smul.addr %s125, 32
        %s127 = scalar_lea.vmem [#allocation5], %s126
        // Predicated region
        $region25: #{tpu_custom_call.1} parent=23 // pred_check
          %p128 = pneg %p50
        $region26: #{tpu_custom_call.1} parent=23 // pred_check_branch
          %130 = sbr.rel (%p128) target = $region28
        $region27: #{tpu_custom_call.1} parent=23 // pred_region
          %131 = dma.done %s124, 512
        $region28: #{tpu_custom_call.1} parent=23 // pred_fallthru
          _
        %s132 = sand.u32 %s37, 1
        %s133 = scalar_lea.sflag [#allocation6], %s132
        %s134 = sand.u32 %s37, 1
        %s135 = smul.addr %s134, 32
        %s136 = scalar_lea.vmem [#allocation5], %s135
        %p137 = pneg %p50
        %p138 = pneg %p47
        %p139 = pneg %p76
        %p140 = pneg %p73
        %p141 = scmp.lt.s32.totalorder %s19, 1
        %s142 = scalar_select %p141, %s19, 1
        %s143 = smul.addr %s142, 8
        %s144 = scalar_lea.vmem %s1, %s143
        %s145 = smul.u32 4, %s20
        %p146 = scmp.lt.s32.totalorder %s19, 1
        %s147 = scalar_select %p146, %s19, 1
        %s148 = smul.addr %s147, 8
        %s149 = scalar_lea.vmem %s1, %s148
        %p150 = scmp.eq.s32.totalorder %s20, 0
        // Predicated region
        $region29: #{tpu_custom_call.1} parent=23 // pred_check
          %p151 = pneg %p150
        $region30: #{tpu_custom_call.1} parent=23 // pred_check_branch
          %153 = sbr.rel (%p151) target = $region32
        $region31: #{tpu_custom_call.1} parent=23 // pred_region
          %vm154 = vcmask 7168
          %155 = vst.msk [vmem:[#allocation2] sm:$0xff] %vm154, -inf
          %156 = vst.msk [vmem:[#allocation3] sm:$0xff] %vm154, 0.0
          %157 = vst.msk [vmem:[#allocation4] sm:$0xff] %vm154, 0.0
        $region32: #{tpu_custom_call.1} parent=23 // pred_fallthru
          _
        %v158 = vld [vmem:[%s127] sm:$0xff]
        %v159 = vld [vmem:[%s127 + $0x8] sm:$0xff]
        %v160 = vld [vmem:[%s127 + $0x10] sm:$0xff]
        %v161 = vld [vmem:[%s127 + $0x18] sm:$0xff]
        %v162 = vld [vmem:[#allocation2] sm:$0xff]
        %v163 = vmax.f32 %v158, %v159
        %v164 = vmax.f32 %v160, %v161
        %v165 = vmax.f32 %v163, %v164
        %166 = vmax.xlane.f32.xlu0 %v165
        %v167 = vpop.xlane.xlu0 %166
        %v168 = vmax.f32 %v162, %v167
        %v169 = vld [vmem:[#allocation3] sm:$0xff]
        %v170 = vsub.f32 %v162, %v168
        %v171 = vmul.f32 %v170, 1.442695
        %v172 = vpow.pop %v171
        %v173 = vmul.f32 %v169, %v172
        %175 = vset.pattern.permute.xlu0 0
        %176 = vperm.xlu0 %175, %v168
        %v177 = vpop.permute.xlu0 %176
        %v179 = vsub.f32 %v158, %v177
        %v180 = vsub.f32 %v159, %v177
        %v181 = vsub.f32 %v160, %v177
        %v182 = vsub.f32 %v161, %v177
        %v183 = vmul.f32 %v179, 1.442695
        %v184 = vpow.pop %v183
        %v185 = vmul.f32 %v180, 1.442695
        %v186 = vpow.pop %v185
        %v187 = vmul.f32 %v181, 1.442695
        %v188 = vpow.pop %v187
        %v189 = vmul.f32 %v182, 1.442695
        %v190 = vpow.pop %v189
        %v191 = vadd.f32 %v184, %v186
        %v192 = vadd.f32 %v191, %v188
        %v193 = vadd.f32 %v192, %v190
        %194 = vadd.xlane.f32.xlu0 %v193
        %v195 = vpop.xlane.xlu0 %194
        %v196 = vadd.f32 %v173, %v195
        %vm197 = vcmask 7168
        %198 = vst.msk [vmem:[#allocation3] sm:$0xff] %vm197, %v196
        %199 = vst.msk [vmem:[#allocation2] sm:$0xff] %vm197, %v168
        %v200 = vld [vmem:[#allocation4] sm:$0xff]
        %v201 = vadd.f32 %v158, %v159
        %v202 = vadd.f32 %v201, %v160
        %v203 = vadd.f32 %v202, %v161
        %204 = vadd.xlane.f32.xlu0 %v203
        %v205 = vpop.xlane.xlu0 %204
        %v206 = vadd.f32 %v200, %v205
        %207 = vst.msk [vmem:[#allocation4] sm:$0xff] %vm197, %v206
        // Predicated region
        $region33: #{tpu_custom_call.1} parent=23 // pred_check
          %p208 = pneg %p150
        $region34: #{tpu_custom_call.1} parent=23 // pred_check_branch
          %210 = sbr.rel (%p208) target = $region36
        $region35: #{tpu_custom_call.1} parent=23 // pred_region
          %v211 = vld [vmem:[#allocation2] sm:$0xff]
          %v212 = vld [vmem:[#allocation3] sm:$0xff]
          %v213 = vlog2.pop %v212
          %v214 = vmul.f32 %v213, 0.6931472
          %v215 = vadd.f32 %v211, %v214
          %v216 = vld [vmem:[#allocation4] sm:$0xff]
          %v217 = vmul.f32 %v216, 0.001953125
          %v218 = vsub.f32 %v215, %v217
          %v219 = vmul.f32 %v218, 1.442695
          %v220 = vpow.pop %v219
          %221 = vst.msk [vmem:[%s149] sm:$0xff] %vm197, %v220
        $region36: #{tpu_custom_call.1} parent=23 // pred_fallthru
          _
        %p222 = scmp.lt.s32.totalorder %s19, 1
        %s223 = scalar_select %p222, %s19, 1
        %s224 = smul.addr %s223, 8
        %s225 = scalar_lea.vmem %s1, %s224
        // Predicated region
        $region37: #{tpu_custom_call.1} parent=23 // pred_check
          %p226 = pneg %p73
        $region38: #{tpu_custom_call.1} parent=23 // pred_check_branch
          %228 = sbr.rel (%p226) target = $region40
        $region39: #{tpu_custom_call.1} parent=23 // pred_region
          _
        $region40: #{tpu_custom_call.1} parent=23 // pred_fallthru
          _
      $region24: #{tpu_custom_call.1} parent=5 // pred_fallthru
        _
      %p229 = scmp.le.s32.totalorder 2, %s10
      // Predicated region
      $region41: #{tpu_custom_call.1} parent=5 // pred_check
        %p230 = pneg %p229
      $region42: #{tpu_custom_call.1} parent=5 // pred_check_branch
        %232 = sbr.rel (%p230) target = $region44
      $region43: #{tpu_custom_call.1} parent=5 // pred_region
        %s233 = ssub.s32 %s10, 2
        // Predicated region
        $region45: #{tpu_custom_call.1} parent=43 // pred_check
          %p234 = pneg %p79
        $region46: #{tpu_custom_call.1} parent=43 // pred_check_branch
          %236 = sbr.rel (%p234) target = $region48
        $region47: #{tpu_custom_call.1} parent=43 // pred_region
          %p237 = scmp.lt.s32.totalorder %s21, 1
          %s238 = scalar_select %p237, %s21, 1
          %s239 = smul.addr %s238, 8
          %s240 = scalar_lea.vmem %s1, %s239
        $region48: #{tpu_custom_call.1} parent=43 // pred_fallthru
          _
      $region44: #{tpu_custom_call.1} parent=5 // pred_fallthru
        _
    $region6: #{tpu_custom_call.1} parent=1 // loop_footer
      %s14 = sadd.s32 1, %s10
    $region7: #{tpu_custom_call.1} parent=1 // loop_footer_branch
      %9 = sbr.rel target = $region3
    $region8: #{tpu_custom_call.1} parent=1 // loop_exit
      _
    %241 = vsyncpa [#allocation6], 1
    %s242 = scalar_lea.sflag [#allocation6], 1
    %243 = vsyncpa %s242, 1

</llo_original>
